<compile_context>
chip_gen: v7x
topology: tpu7x:2x2x1
jax: 0.10.0
libtpu: 0.0.40
codegen_flags: <defaults>
</compile_context>

<pallas_src>
import jax
import jax.numpy as jnp
from jax.experimental import pallas as pl
from jax.experimental.pallas import tpu as pltpu

_LANE = 128
# Native minimum sublane count per element size (f32 -> 8, bf16 -> 16, int8/fp8 -> 32).
_MIN_SUBLANES = {4: 8, 2: 16, 1: 32}
# Per-tile byte budget: 4 buffers (in + out, double-buffered) stay <= 16 MiB.
_TARGET_TILE_BYTES = 4 * 1024 * 1024
_VMEM_LIMIT_BYTES = 32 * 1024 * 1024  # <= physical VMEM on v5e/v6e (128 MiB) and v7x (64 MiB)


def _identity_copy_kernel(x_ref, o_ref):
    # Pure pass-through: copy the VMEM tile from input to output.
    o_ref[...] = x_ref[...]


def _choose_layout(n_elem: int, sub: int):
    """Factor n_elem = rows * cols with cols a wide multiple of 128 and rows % sub == 0."""
    for cols in (4096, 2048, 1024, 512, 256, 128):
        if n_elem % cols == 0:
            rows = n_elem // cols
            if rows % sub == 0:
                return rows, cols
    return None


def _pick_tile_rows(rows: int, cols: int, itemsize: int, sub: int) -> int:
    """Largest multiple of `sub` dividing `rows` whose tile fits the VMEM budget."""
    max_rows = max(sub, (_TARGET_TILE_BYTES // (cols * itemsize)) // sub * sub)
    t = min(rows, max_rows)
    t = (t // sub) * sub
    while t > sub and rows % t != 0:
        t -= sub
    t = max(t, sub)
    # Prefer >=2 grid steps (v7x megacore can shard a "parallel" axis across its
    # 2 TensorCores), but only when the halved tile stays large and sublane-aligned.
    if rows == t and t % (2 * sub) == 0:
        half = t // 2
        if rows % half == 0 and half * cols * itemsize >= (1 << 16):
            t = half
    return t


def _identity_pallas(x: jax.Array) -> jax.Array:
    orig_shape = x.shape
    dtype = x.dtype
    n = x.size
    if n == 0:
        return x

    itemsize = jnp.dtype(dtype).itemsize
    sub = _MIN_SUBLANES.get(itemsize, 8)

    flat = x.reshape(-1)
    pad = 0
    layout = _choose_layout(n, sub)
    if layout is None:
        # Unaligned: pad to the native (sub, 128) granularity and reuse the same
        # tiled, pipelined path (never a single whole-array VMEM block).
        unit = sub * _LANE
        padded_n = ((n + unit - 1) // unit) * unit
        pad = padded_n - n
        flat = jnp.pad(flat, (0, pad))
        layout = _choose_layout(padded_n, sub)

    rows, cols = layout
    tile_rows = _pick_tile_rows(rows, cols, itemsize, sub)
    grid = (rows // tile_rows,)

    x2 = flat.reshape(rows, cols)
    out2 = pl.pallas_call(
        _identity_copy_kernel,
        out_shape=jax.ShapeDtypeStruct((rows, cols), dtype),
        grid_spec=pltpu.PrefetchScalarGridSpec(
            num_scalar_prefetch=0,
            grid=grid,
            in_specs=[pl.BlockSpec((tile_rows, cols), lambda i: (i, 0))],
            out_specs=pl.BlockSpec((tile_rows, cols), lambda i: (i, 0)),
        ),
        # Output aliases the input buffer: no second HBM allocation; under jit
        # with donation the copy is fully in-place / elidable.
        input_output_aliases={0: 0},
        compiler_params=pltpu.CompilerParams(
            dimension_semantics=("parallel",),
            vmem_limit_bytes=_VMEM_LIMIT_BYTES,
        ),
    )(x2)

    out_flat = out2.reshape(-1)
    if pad:
        out_flat = out_flat[:n]
    return out_flat.reshape(orig_shape)


def identity(x: jax.Array, *, use_pallas: bool = False) -> jax.Array:
    """Identity forward pass.

    Default: return `x` directly (true no-op, zero HBM traffic) — this is the
    faithful and fastest implementation of nn.Identity.
    `use_pallas=True`: materialize the result through the optimized Pallas copy
    kernel (aliased in/out, lane-dense tiles, VMEM-budgeted pipelining).
    """
    if not use_pallas:
        return x
    return _identity_pallas(x)


if __name__ == "__main__":
    key = jax.random.PRNGKey(0)
    # NCHW input, small shapes.
    shape, dtype = (2, 4, 16, 16), jnp.float32
    x = jax.random.normal(key, shape, dtype=dtype)

    # Zero-cost path (preferred for Identity): returns the input unchanged.
    y_fast = identity(x)
    assert y_fast is x

    # Explicit Pallas kernel path.
    y = identity(x, use_pallas=True)
    jax.block_until_ready(y)

    # Reference regenerated deterministically from the same key.
    x_expected = jax.random.normal(jax.random.PRNGKey(0), shape, dtype=dtype)
    assert y.shape == x_expected.shape, (y.shape, x_expected.shape)
    assert y.dtype == x_expected.dtype, (y.dtype, x_expected.dtype)
    assert jnp.array_equal(y, x_expected), "Identity output mismatch"

    print("KERNEL_OK")
</pallas_src>

<mosaic_0001>
module attributes {stable_mosaic.version = 11 : i64} {
  func.func @_identity_copy_kernel(%arg0: i32, %arg1: memref<8x256xf32, #tpu.memory_space<vmem>>, %arg2: memref<8x256xf32, #tpu.memory_space<vmem>>) attributes {dimension_semantics = [#tpu.dimension_semantics<parallel>], iteration_bounds = array<i64: 1>, scalar_prefetch = 0 : i64, scratch_operands = 0 : i64, tpu.core_type = #tpu.core_type<tc>, window_params = [{transform_indices = @transform_0, window_bounds = array<i64: 8, 256>}, {transform_indices = @transform_1, window_bounds = array<i64: 8, 256>}]} {
    %c0 = arith.constant 0 : index
    %c0_0 = arith.constant 0 : index
    %0 = vector.load %arg1[%c0, %c0_0] : memref<8x256xf32, #tpu.memory_space<vmem>>, vector<8x256xf32>
    %c0_1 = arith.constant 0 : index
    %c0_2 = arith.constant 0 : index
    %1 = vector.load %arg2[%c0_1, %c0_2] : memref<8x256xf32, #tpu.memory_space<vmem>>, vector<8x256xf32>
    tpu.vector_store %arg2[%c0_1, %c0_2], %0 {strides = array<i32>} : memref<8x256xf32, #tpu.memory_space<vmem>>, vector<8x256xf32>,
    return
  }
  func.func @transform_0(%arg0: i32) -> (i32, i32) {
    %c0_i32 = arith.constant 0 : i32
    %c0_i32_0 = arith.constant 0 : i32
    return %arg0, %c0_i32 : i32, i32
  }
  func.func @transform_1(%arg0: i32) -> (i32, i32) {
    %c0_i32 = arith.constant 0 : i32
    %c0_i32_0 = arith.constant 0 : i32
    return %arg0, %c0_i32 : i32, i32
  }
}

</mosaic_0001>

<llo_original>
// kernel: tpu_custom_call.1
$region0: #{tpu_custom_call.1}
  #allocation0 [shape = 'u32[]', space=smem, size = 0x4, offset = 0x4, fixed_abs, tag = 'smem constant byte address 0x4 - core index']
  #allocation1 [shape = 'u32[144,128]{1,0:T(1,128)}', space=vmem, size = 0x12000, scoped, tag = 'internal scratch']
  %s0 = inlined_call_operand.hbm [shape: f32[8,256], index: 0, kind: input, shape index: {}, may-alias: {0,1}]
  %s1 = inlined_call_operand.hbm [shape: f32[8,256], index: 1, kind: output, shape index: {}, may-alias: {0,1}]
  %s2 = sld [smem:[#allocation0]]
  $region18: #{tpu_custom_call.1} parent=0
    _
  %s4 = ssub.s32 1, %s2
  %s5 = scalar_select 0, %s4, %s2
  $region1: #{tpu_custom_call.1} parent=0
    #allocation2 [shape = 'u8[8192]{0}', space=vmem, size = 0x2000, scoped, tag = 'input window, operand 0, single buffered']
    #allocation3 [shape = 's32[1]{0}', space=sflag, size = 0x4, scoped, tag = 'scoped memory for tpu_custom_call.1']
    #allocation4 [shape = 's32[1]{0}', space=sflag, size = 0x4, scoped, tag = 'scoped memory for tpu_custom_call.1']
    #allocation5 [shape = 'u8[8192]{0}', space=vmem, size = 0x2000, scoped, tag = 'output window, operand 0, single buffered']
    %6 = vsyncpa [#allocation3], 0
    %7 = vsyncpa [#allocation4], 0
    // Predicated region
    $region2: #{tpu_custom_call.1} parent=1 // pred_check
      _
    $region3: #{tpu_custom_call.1} parent=1 // pred_check_branch
      %9 = sbr.rel (0) target = $region5
    $region4: #{tpu_custom_call.1} parent=1 // pred_region
      %s11 = ssub.s32 256, 256
      %12 = vsyncadd [#allocation3], %s11
      %s14 = sshll.u32 [#allocation2], 4
      %s15 = int_to_ptr.vmem [resolvable:$true] %s14
      %17 = dma.hbm_to_vmem [thread:$0]  %s0, 256, %s15, [#allocation3]
    $region5: #{tpu_custom_call.1} parent=1 // pred_fallthru
      _
    // Predicated region
    $region6: #{tpu_custom_call.1} parent=1 // pred_check
      _
    $region7: #{tpu_custom_call.1} parent=1 // pred_check_branch
      %19 = sbr.rel (0) target = $region9
    $region8: #{tpu_custom_call.1} parent=1 // pred_region
      %20 = dma.done [#allocation3], 256
    $region9: #{tpu_custom_call.1} parent=1 // pred_fallthru
      _
    %v21 = vld [vmem:[#allocation2] sm:$0xff]
    %v22 = vld [vmem:[#allocation2 + $0x8] sm:$0xff]
    %23 = vst [vmem:[#allocation5] sm:$0xff] %v21
    %24 = vst [vmem:[#allocation5 + $0x8] sm:$0xff] %v22
    // Predicated region
    $region10: #{tpu_custom_call.1} parent=1 // pred_check
      _
    $region11: #{tpu_custom_call.1} parent=1 // pred_check_branch
      %26 = sbr.rel (0) target = $region13
    $region12: #{tpu_custom_call.1} parent=1 // pred_region
      %s28 = ssub.s32 256, 256
      %29 = vsyncadd [#allocation4], %s28
      %s31 = sshll.u32 [#allocation5], 4
      %s32 = int_to_ptr.vmem [resolvable:$true] %s31
      %34 = dma.vmem_to_hbm [thread:$0]  %s32, 256, %s1, [#allocation4]
    $region13: #{tpu_custom_call.1} parent=1 // pred_fallthru
      _
    // Predicated region
    $region14: #{tpu_custom_call.1} parent=1 // pred_check
      _
    $region15: #{tpu_custom_call.1} parent=1 // pred_check_branch
      %36 = sbr.rel (0) target = $region17
    $region16: #{tpu_custom_call.1} parent=1 // pred_region
      %37 = dma.done [#allocation4], 256
    $region17: #{tpu_custom_call.1} parent=1 // pred_fallthru
      _
    %38 = vsyncpa [#allocation3], 1
    %39 = vsyncpa [#allocation4], 1

</llo_original>
